<compile_context>
chip_gen: v7x
topology: tpu7x:2x2x1
jax: 0.10.0
libtpu: 0.0.40
codegen_flags: <defaults>
</compile_context>

<pallas_src>
import jax
import jax.numpy as jnp
from jax.experimental import pallas as pl
from jax.experimental.pallas import tpu as pltpu


def _detect_kernel(coef_ref, g_ref, w_ref, x_ref, *out_refs):
    """One (C_pad, ts) tile: 1x1-conv matmul + fused stable sigmoid + decode."""
    if len(out_refs) == 2:
        raw_ref, z_ref = out_refs
    else:
        raw_ref = None
        z_ref = out_refs[0]

    # 1x1 conv == (C_pad, Cin) @ (Cin, ts) on the MXU: bf16 operands,
    # f32 accumulation.  Conv bias is folded into coefficient row 0.
    raw = jnp.dot(w_ref[...], x_ref[...], preferred_element_type=jnp.float32)
    raw = raw + coef_ref[0]                      # (C_pad, 1) lane-broadcast
    if raw_ref is not None:
        raw_ref[...] = raw.astype(raw_ref.dtype)

    # Numerically stable sigmoid: clamp the exponent so exp() cannot overflow
    # to inf (which would NaN the Newton refinement).  exp + approximate
    # reciprocal go to the EUP; one Newton step (VPU) restores f32 accuracy.
    den = 1.0 + jnp.exp(jnp.minimum(-raw, 80.0))
    r = pl.reciprocal(den, approx=True)
    sig = r * (2.0 - den * r)

    gx = g_ref[0:1, :]                           # (1, ts): stride * x-coordinate
    gy = g_ref[1:2, :]                           # (1, ts): stride * y-coordinate

    # Blended box decode, one polynomial for every channel row:
    #   xy rows : (2*sig - 0.5 + grid) * stride
    #   wh rows : (2*sig)^2 * anchor
    #   rest    : sig
    z_ref[...] = ((coef_ref[1] * sig + coef_ref[2]) * sig
                  + coef_ref[3] + coef_ref[4] * gx + coef_ref[5] * gy)


def _round_up(x, m):
    return ((x + m - 1) // m) * m


def _choose_ts(S, bs, max_ts=2048):
    """Spatial (lane) tile size.

    Prefers: multiple of 128 dividing S (no ragged tail), <= max_ts, and at
    least two total grid steps when bs == 1 so both v7x TensorCores get work.
    """
    if S <= max_ts:
        if bs >= 2 or S <= 256:
            return S                              # one full-width block per batch
        # bs == 1: split the spatial axis so both TensorCores have a tile
        # (ragged tail, if any, is handled by Pallas masked stores).
        return min(S, _round_up((S + 1) // 2, 128))
    # Large map: largest multiple of 128 <= max_ts that divides S evenly
    # (e.g. S=6400 at 80x80 -> ts=1280).
    t = (max_ts // 128) * 128
    while t >= 128:
        if S % t == 0:
            return t
        t -= 128
    return 1024


def detect_layer(x_nchw, weight, bias, anchors_i, stride_i, nc,
                 *, with_raw=True, compute_dtype=jnp.bfloat16):
    """One detection level.

    x_nchw:    (bs, Cin, ny, nx) float32   (PyTorch NCHW input)
    weight:    (na*no, Cin, 1, 1) float32  (Conv2d weight)
    bias:      (na*no,)           float32
    anchors_i: (na, 2)            float32
    Returns (raw, z):
      raw: x[i] of shape (bs, na, ny, nx, no)   (None when with_raw=False)
      z:   decoded boxes of shape (bs, na*ny*nx, no)
    """
    bs, cin, ny, nx = x_nchw.shape
    na = anchors_i.shape[0]
    no = nc + 5
    ncols = na * no
    c_pad = _round_up(ncols, 8)
    S = ny * nx

    # Free reshape (no HBM transpose); cast operands to the MXU-native dtype.
    # In a full model the upstream layer would already emit bf16 and this cast
    # fuses away; accumulation stays f32 so raw keeps its accuracy.
    x3d = x_nchw.reshape(bs, cin, S).astype(compute_dtype)

    w2 = weight.reshape(ncols, cin).astype(jnp.float32)
    if c_pad != ncols:
        w2 = jnp.pad(w2, ((0, c_pad - ncols), (0, 0)))
        b_pad = jnp.pad(bias.astype(jnp.float32), (0, c_pad - ncols))
    else:
        b_pad = bias.astype(jnp.float32)
    w2 = w2.astype(compute_dtype)

    # Per-channel decode coefficients: z = (A*sig + B)*sig + C + Gx*gx + Gy*gy
    stride_f = jnp.float32(stride_i)
    c_idx = jnp.arange(c_pad)
    o_idx = c_idx % no
    a_idx = jnp.minimum(c_idx // no, na - 1)
    valid = c_idx < ncols
    is_xy = (o_idx < 2) & valid
    is_wh = ((o_idx == 2) | (o_idx == 3)) & valid
    anch = anchors_i[a_idx, jnp.clip(o_idx - 2, 0, 1)].astype(jnp.float32)
    A = jnp.where(is_wh, 4.0 * anch, 0.0)
    B = jnp.where(is_wh, 0.0, jnp.where(is_xy, 2.0 * stride_f, 1.0))
    C = jnp.where(is_xy, -0.5 * stride_f, 0.0)
    Gx = jnp.where((o_idx == 0) & valid, 1.0, 0.0)
    Gy = jnp.where((o_idx == 1) & valid, 1.0, 0.0)
    coef = jnp.stack([b_pad, A, B, C, Gx, Gy], axis=0).reshape(6, c_pad, 1)
    coef = coef.astype(jnp.float32)

    # Per-position grid coordinates, pre-multiplied by stride.
    s_idx = jnp.arange(S)
    gxs = (s_idx % nx).astype(jnp.float32) * stride_f
    gys = (s_idx // nx).astype(jnp.float32) * stride_f
    g = jnp.stack([gxs, gys], axis=0)                   # (2, S)

    # Tiling: lanes = spatial positions (lane-dense), sublanes = channels.
    ts = _choose_ts(S, bs)
    grid = (bs, pl.cdiv(S, ts))

    n_out = 2 if with_raw else 1
    out_block = pl.BlockSpec((None, c_pad, ts), lambda b, s: (b, 0, s))
    out_sds = jax.ShapeDtypeStruct((bs, c_pad, S), jnp.float32)
    out_shape = (out_sds,) * n_out
    out_specs = (out_block,) * n_out

    # VMEM budget: double-buffered streamed tiles + resident constants, with
    # headroom, capped at 48 MiB so the same tiling also fits v7x (64 MiB/TC).
    in_elt = jnp.dtype(compute_dtype).itemsize
    step_bytes = cin * ts * in_elt + n_out * c_pad * ts * 4
    resident_bytes = c_pad * cin * in_elt + 6 * c_pad * 4 + 2 * ts * 4
    vmem_limit = int(min(48 * 1024 * 1024,
                         max(32 * 1024 * 1024,
                             2 * (2 * step_bytes + 2 * resident_bytes))))

    cost = pl.CostEstimate(
        flops=int(2 * bs * c_pad * cin * S + 12 * bs * c_pad * S),
        transcendentals=int(2 * bs * c_pad * S),
        bytes_accessed=int(bs * cin * S * in_elt + c_pad * cin * in_elt
                           + 6 * c_pad * 4 + 2 * S * 4
                           + n_out * bs * c_pad * S * 4))

    outs = pl.pallas_call(
        _detect_kernel,
        out_shape=out_shape,
        grid=grid,
        in_specs=[
            pl.BlockSpec((6, c_pad, 1), lambda b, s: (0, 0, 0)),    # packed coefs
            pl.BlockSpec((2, ts), lambda b, s: (0, s)),             # grid coords
            pl.BlockSpec((c_pad, cin), lambda b, s: (0, 0)),        # conv weight
            pl.BlockSpec((None, cin, ts), lambda b, s: (b, 0, s)),  # activations
        ],
        out_specs=out_specs,
        compiler_params=pltpu.CompilerParams(
            dimension_semantics=("parallel", "parallel"),
            vmem_limit_bytes=vmem_limit),
        cost_estimate=cost,
    )(coef, g, w2, x3d)

    # Glue back to PyTorch conventions (channel = a*no + o, spatial = y*nx + x).
    # TODO(synk): skip these permutes when downstream can take (bs, C_pad, S).
    if with_raw:
        raw_full, z_full = outs
        raw = (raw_full[:, :ncols, :].reshape(bs, na, no, ny, nx)
               .transpose(0, 1, 3, 4, 2))
    else:
        z_full = outs[0]
        raw = None
    z = (z_full[:, :ncols, :].reshape(bs, na, no, ny, nx)
         .transpose(0, 1, 3, 4, 2).reshape(bs, na * ny * nx, no))
    return raw, z


def detect_forward(xs, weights, biases, anchors, strides, nc,
                   *, with_raw=True, compute_dtype=jnp.bfloat16):
    """Full Detect forward (inference).

    with_raw=True : returns (cat(z, 1), [x_0, x_1, ...])  -- module semantics.
    with_raw=False: returns cat(z, 1) only (skips the raw HBM output stream).
    """
    raws, zs = [], []
    for i, x in enumerate(xs):
        raw, z = detect_layer(x, weights[i], biases[i], anchors[i], strides[i],
                              nc, with_raw=with_raw, compute_dtype=compute_dtype)
        if with_raw:
            raws.append(raw)
        zs.append(z)
    z_cat = jnp.concatenate(zs, axis=1)
    return (z_cat, raws) if with_raw else z_cat


# ------------------------- pure-JAX reference -------------------------
def _reference(xs, weights, biases, anchors, strides, nc,
               compute_dtype=jnp.float32):
    raws, zs = [], []
    for i, x in enumerate(xs):
        bs, cin, ny, nx = x.shape
        na = anchors[i].shape[0]
        no = nc + 5
        xc = x.astype(compute_dtype).astype(jnp.float32)
        w2 = (weights[i].reshape(na * no, cin)
              .astype(compute_dtype).astype(jnp.float32))
        conv = jnp.einsum("bchw,oc->bohw", xc, w2) + biases[i][None, :, None, None]
        xi = conv.reshape(bs, na, no, ny, nx).transpose(0, 1, 3, 4, 2)
        raws.append(xi)
        yv, xv = jnp.meshgrid(jnp.arange(ny), jnp.arange(nx), indexing="ij")
        grid = jnp.stack([xv, yv], 2).reshape(1, 1, ny, nx, 2).astype(jnp.float32)
        y = jax.nn.sigmoid(xi)
        xy = (y[..., 0:2] * 2.0 - 0.5 + grid) * strides[i]
        wh = (y[..., 2:4] * 2.0) ** 2 * anchors[i].reshape(1, na, 1, 1, 2)
        y = jnp.concatenate([xy, wh, y[..., 4:]], axis=-1)
        zs.append(y.reshape(bs, -1, no))
    return jnp.concatenate(zs, axis=1), raws


if __name__ == "__main__":
    key = jax.random.PRNGKey(0)

    nc = 3                      # small class count  -> no = 8
    anchors_list = [[10.0, 13.0, 16.0, 30.0, 33.0, 23.0],
                    [30.0, 61.0, 62.0, 45.0, 59.0, 119.0]]
    ch = (4, 8)                 # input channels per level
    spatial = (16, 8)           # feature-map sizes per level
    strides = [8.0, 16.0]
    bs = 2
    nl = len(anchors_list)
    na = len(anchors_list[0]) // 2
    no = nc + 5

    anchors = jnp.array(anchors_list, dtype=jnp.float32).reshape(nl, na, 2)

    keys = jax.random.split(key, 1 + 2 * nl)
    xs, weights, biases = [], [], []
    for i in range(nl):
        xs.append(jax.random.normal(keys[1 + 2 * i],
                                    (bs, ch[i], spatial[i], spatial[i]),
                                    dtype=jnp.float32))
        weights.append(0.1 * jax.random.normal(keys[2 + 2 * i],
                                               (na * no, ch[i], 1, 1),
                                               dtype=jnp.float32))
        biases.append(jnp.linspace(-0.5, 0.5, na * no, dtype=jnp.float32))

    # Full module output: (cat(z, 1), [x_0, x_1, ...])
    z_out, x_out = detect_forward(xs, weights, biases, anchors, strides, nc,
                                  with_raw=True)
    jax.block_until_ready(z_out)
    for xo in x_out:
        jax.block_until_ready(xo)

    # Inference-only fast path: z only (drops the raw-output HBM stream).
    z_only = detect_forward(xs, weights, biases, anchors, strides, nc,
                            with_raw=False)
    jax.block_until_ready(z_only)

    # Precision-matched reference (same bf16 rounding of x/w as the kernel).
    z_ref, x_ref = _reference(xs, weights, biases, anchors, strides, nc,
                              compute_dtype=jnp.bfloat16)
    # Original full-f32 module semantics (loose tolerance covers bf16 operands).
    z_f32, x_f32 = _reference(xs, weights, biases, anchors, strides, nc,
                              compute_dtype=jnp.float32)

    assert z_out.shape == (bs, sum(na * s * s for s in spatial), no)
    assert all(a.shape == b.shape for a, b in zip(x_out, x_ref))
    assert jnp.allclose(z_out, z_ref, atol=2e-3, rtol=2e-3)
    assert all(jnp.allclose(a, b, atol=2e-3, rtol=2e-3)
               for a, b in zip(x_out, x_ref))
    assert jnp.allclose(z_only, z_out, atol=1e-4, rtol=1e-5)
    assert jnp.allclose(z_out, z_f32, atol=2e-1, rtol=5e-2)
    assert all(jnp.allclose(a, b, atol=1e-1, rtol=5e-2)
               for a, b in zip(x_out, x_f32))

    print("KERNEL_OK")
</pallas_src>

<mosaic_0001>
module attributes {stable_mosaic.version = 11 : i64} {
  func.func @_detect_kernel(%arg0: i32, %arg1: i32, %arg2: memref<6x24x1xf32, #tpu.memory_space<vmem>>, %arg3: memref<2x256xf32, #tpu.memory_space<vmem>>, %arg4: memref<24x4xbf16, #tpu.memory_space<vmem>>, %arg5: memref<1x4x256xbf16, #tpu.memory_space<vmem>>, %arg6: memref<1x24x256xf32, #tpu.memory_space<vmem>>, %arg7: memref<1x24x256xf32, #tpu.memory_space<vmem>>) attributes {dimension_semantics = [#tpu.dimension_semantics<parallel>, #tpu.dimension_semantics<parallel>], iteration_bounds = array<i64: 2, 1>, scalar_prefetch = 0 : i64, scratch_operands = 0 : i64, tpu.core_type = #tpu.core_type<tc>, window_params = [{pipeline_mode = #tpu.pipeline_mode<synchronous>, transform_indices = @transform_0, window_bounds = array<i64: 6, 24, 1>}, {transform_indices = @transform_1, window_bounds = array<i64: 2, 256>}, {pipeline_mode = #tpu.pipeline_mode<synchronous>, transform_indices = @transform_2, window_bounds = array<i64: 24, 4>}, {transform_indices = @transform_3, window_bounds = array<i64: 1, 4, 256>}, {transform_indices = @transform_4, window_bounds = array<i64: 1, 24, 256>}, {transform_indices = @transform_5, window_bounds = array<i64: 1, 24, 256>}]} {
    %c0 = arith.constant 0 : index
    %c0_0 = arith.constant 0 : index
    %0 = vector.load %arg4[%c0, %c0_0] : memref<24x4xbf16, #tpu.memory_space<vmem>>, vector<24x4xbf16>
    %c0_1 = arith.constant 0 : index
    %c0_2 = arith.constant 0 : index
    %c0_3 = arith.constant 0 : index
    %1 = vector.load %arg5[%c0_1, %c0_2, %c0_3] : memref<1x4x256xbf16, #tpu.memory_space<vmem>>, vector<1x4x256xbf16>
    %2 = vector.shape_cast %1 : vector<1x4x256xbf16> to vector<4x256xbf16>
    %cst = arith.constant dense<0.000000e+00> : vector<24x256xf32>
    %3 = tpu.matmul %0, %2, %cst {dimension_numbers = #tpu.dot_dimension_numbers<[1], [0], [0], [1], [0, 0, 1, 1], [], []>} : vector<24x4xbf16>, vector<4x256xbf16>, vector<24x256xf32> -> vector<24x256xf32>
    %c0_4 = arith.constant 0 : index
    %c0_5 = arith.constant 0 : index
    %c0_6 = arith.constant 0 : index
    %4 = vector.load %arg2[%c0_4, %c0_5, %c0_6] : memref<6x24x1xf32, #tpu.memory_space<vmem>>, vector<1x24x1xf32>
    %5 = vector.shape_cast %4 : vector<1x24x1xf32> to vector<24x1xf32>
    %6 = vector.broadcast %5 : vector<24x1xf32> to vector<24x256xf32>
    %7 = arith.addf %3, %6 : vector<24x256xf32>
    %c0_7 = arith.constant 0 : index
    %c0_8 = arith.constant 0 : index
    %c0_9 = arith.constant 0 : index
    %8 = vector.load %arg6[%c0_7, %c0_8, %c0_9] : memref<1x24x256xf32, #tpu.memory_space<vmem>>, vector<1x24x256xf32>
    %9 = vector.shape_cast %8 : vector<1x24x256xf32> to vector<24x256xf32>
    %10 = vector.shape_cast %7 : vector<24x256xf32> to vector<1x24x256xf32>
    tpu.vector_store %arg6[%c0_7, %c0_8, %c0_9], %10 {strides = array<i32>} : memref<1x24x256xf32, #tpu.memory_space<vmem>>, vector<1x24x256xf32>,
    %cst_10 = arith.constant 0.000000e+00 : f32
    %11 = vector.broadcast %cst_10 : f32 to vector<24x256xf32>
    %12 = arith.subf %11, %7 : vector<24x256xf32>
    %cst_11 = arith.constant 8.000000e+01 : f32
    %13 = vector.broadcast %cst_11 : f32 to vector<24x256xf32>
    %14 = arith.minimumf %12, %13 : vector<24x256xf32>
    %15 = math.exp %14 : vector<24x256xf32>
    %cst_12 = arith.constant 1.000000e+00 : f32
    %16 = vector.broadcast %cst_12 : f32 to vector<24x256xf32>
    %17 = arith.addf %16, %15 : vector<24x256xf32>
    %18 = tpu.reciprocal %17 {approx = true} : vector<24x256xf32> -> vector<24x256xf32>
    %19 = arith.mulf %17, %18 : vector<24x256xf32>
    %cst_13 = arith.constant 2.000000e+00 : f32
    %20 = vector.broadcast %cst_13 : f32 to vector<24x256xf32>
    %21 = arith.subf %20, %19 : vector<24x256xf32>
    %22 = arith.mulf %18, %21 : vector<24x256xf32>
    %c0_14 = arith.constant 0 : index
    %c0_15 = arith.constant 0 : index
    %23 = vector.load %arg3[%c0_14, %c0_15] : memref<2x256xf32, #tpu.memory_space<vmem>>, vector<1x256xf32>
    %c1 = arith.constant 1 : index
    %c0_16 = arith.constant 0 : index
    %24 = vector.load %arg3[%c1, %c0_16] : memref<2x256xf32, #tpu.memory_space<vmem>>, vector<1x256xf32>
    %c1_17 = arith.constant 1 : index
    %c0_18 = arith.constant 0 : index
    %c0_19 = arith.constant 0 : index
    %25 = vector.load %arg2[%c1_17, %c0_18, %c0_19] : memref<6x24x1xf32, #tpu.memory_space<vmem>>, vector<1x24x1xf32>
    %26 = vector.shape_cast %25 : vector<1x24x1xf32> to vector<24x1xf32>
    %27 = vector.broadcast %26 : vector<24x1xf32> to vector<24x256xf32>
    %28 = arith.mulf %27, %22 : vector<24x256xf32>
    %c2 = arith.constant 2 : index
    %c0_20 = arith.constant 0 : index
    %c0_21 = arith.constant 0 : index
    %29 = vector.load %arg2[%c2, %c0_20, %c0_21] : memref<6x24x1xf32, #tpu.memory_space<vmem>>, vector<1x24x1xf32>
    %30 = vector.shape_cast %29 : vector<1x24x1xf32> to vector<24x1xf32>
    %31 = vector.broadcast %30 : vector<24x1xf32> to vector<24x256xf32>
    %32 = arith.addf %28, %31 : vector<24x256xf32>
    %33 = arith.mulf %32, %22 : vector<24x256xf32>
    %c3 = arith.constant 3 : index
    %c0_22 = arith.constant 0 : index
    %c0_23 = arith.constant 0 : index
    %34 = vector.load %arg2[%c3, %c0_22, %c0_23] : memref<6x24x1xf32, #tpu.memory_space<vmem>>, vector<1x24x1xf32>
    %35 = vector.shape_cast %34 : vector<1x24x1xf32> to vector<24x1xf32>
    %36 = vector.broadcast %35 : vector<24x1xf32> to vector<24x256xf32>
    %37 = arith.addf %33, %36 : vector<24x256xf32>
    %c4 = arith.constant 4 : index
    %c0_24 = arith.constant 0 : index
    %c0_25 = arith.constant 0 : index
    %38 = vector.load %arg2[%c4, %c0_24, %c0_25] : memref<6x24x1xf32, #tpu.memory_space<vmem>>, vector<1x24x1xf32>
    %39 = vector.shape_cast %38 : vector<1x24x1xf32> to vector<24x1xf32>
    %40 = vector.broadcast %39 : vector<24x1xf32> to vector<24x256xf32>
    %41 = vector.broadcast %23 : vector<1x256xf32> to vector<24x256xf32>
    %42 = arith.mulf %40, %41 : vector<24x256xf32>
    %43 = arith.addf %37, %42 : vector<24x256xf32>
    %c5 = arith.constant 5 : index
    %c0_26 = arith.constant 0 : index
    %c0_27 = arith.constant 0 : index
    %44 = vector.load %arg2[%c5, %c0_26, %c0_27] : memref<6x24x1xf32, #tpu.memory_space<vmem>>, vector<1x24x1xf32>
    %45 = vector.shape_cast %44 : vector<1x24x1xf32> to vector<24x1xf32>
    %46 = vector.broadcast %45 : vector<24x1xf32> to vector<24x256xf32>
    %47 = vector.broadcast %24 : vector<1x256xf32> to vector<24x256xf32>
    %48 = arith.mulf %46, %47 : vector<24x256xf32>
    %49 = arith.addf %43, %48 : vector<24x256xf32>
    %c0_28 = arith.constant 0 : index
    %c0_29 = arith.constant 0 : index
    %c0_30 = arith.constant 0 : index
    %50 = vector.load %arg7[%c0_28, %c0_29, %c0_30] : memref<1x24x256xf32, #tpu.memory_space<vmem>>, vector<1x24x256xf32>
    %51 = vector.shape_cast %50 : vector<1x24x256xf32> to vector<24x256xf32>
    %52 = vector.shape_cast %49 : vector<24x256xf32> to vector<1x24x256xf32>
    tpu.vector_store %arg7[%c0_28, %c0_29, %c0_30], %52 {strides = array<i32>} : memref<1x24x256xf32, #tpu.memory_space<vmem>>, vector<1x24x256xf32>,
    return
  }
  func.func @transform_0(%arg0: i32, %arg1: i32) -> (i32, i32, i32) {
    %c0_i32 = arith.constant 0 : i32
    %c0_i32_0 = arith.constant 0 : i32
    %c0_i32_1 = arith.constant 0 : i32
    %c0_i32_2 = arith.constant 0 : i32
    return %c0_i32, %c0_i32_0, %c0_i32_1 : i32, i32, i32
  }
  func.func @transform_1(%arg0: i32, %arg1: i32) -> (i32, i32) {
    %c0_i32 = arith.constant 0 : i32
    %c0_i32_0 = arith.constant 0 : i32
    return %c0_i32, %arg1 : i32, i32
  }
  func.func @transform_2(%arg0: i32, %arg1: i32) -> (i32, i32) {
    %c0_i32 = arith.constant 0 : i32
    %c0_i32_0 = arith.constant 0 : i32
    %c0_i32_1 = arith.constant 0 : i32
    return %c0_i32, %c0_i32_0 : i32, i32
  }
  func.func @transform_3(%arg0: i32, %arg1: i32) -> (i32, i32, i32) {
    %c0_i32 = arith.constant 0 : i32
    %c0_i32_0 = arith.constant 0 : i32
    return %arg0, %c0_i32, %arg1 : i32, i32, i32
  }
  func.func @transform_4(%arg0: i32, %arg1: i32) -> (i32, i32, i32) {
    %c0_i32 = arith.constant 0 : i32
    %c0_i32_0 = arith.constant 0 : i32
    return %arg0, %c0_i32, %arg1 : i32, i32, i32
  }
  func.func @transform_5(%arg0: i32, %arg1: i32) -> (i32, i32, i32) {
    %c0_i32 = arith.constant 0 : i32
    %c0_i32_0 = arith.constant 0 : i32
    return %arg0, %c0_i32, %arg1 : i32, i32, i32
  }
}

</mosaic_0001>

<llo_original>
// kernel: tpu_custom_call.1
$region0: #{tpu_custom_call.1}
  #allocation0 [shape = 'u32[]', space=smem, size = 0x4, offset = 0x4, fixed_abs, tag = 'smem constant byte address 0x4 - core index']
  #allocation1 [shape = 'u32[144,128]{1,0:T(1,128)}', space=vmem, size = 0x12000, scoped, tag = 'internal scratch']
  %s0 = inlined_call_operand.vmem [shape: f32[6,24,1], index: 0, kind: input, shape index: {}]
  %s1 = inlined_call_operand.vmem [shape: f32[2,256], index: 1, kind: input, shape index: {}]
  %s2 = inlined_call_operand.vmem [shape: bf16[24,4], index: 2, kind: input, shape index: {}]
  %s3 = inlined_call_operand.vmem [shape: bf16[2,4,256], index: 3, kind: input, shape index: {}]
  %s4 = inlined_call_operand.hbm [shape: f32[2,24,256], index: 4, kind: output, shape index: {0}]
  %s5 = inlined_call_operand.hbm [shape: f32[2,24,256], index: 5, kind: output, shape index: {1}]
  %6 = xla_tuple %s4, %s5
  %s7 = sld [smem:[#allocation0]]
  $region57: #{tpu_custom_call.1} parent=0
    _
  %s9 = ssub.s32 1, %s7
  %s10 = scalar_select 0, %s9, %s7
  $region1: #{tpu_custom_call.1} parent=0
    #allocation2 [shape = 'u8[49152]{0}', space=vmem, size = 0xc000, scoped, tag = 'output window, operand 0']
    #allocation3 [shape = 's32[2]{0}', space=sflag, size = 0x8, scoped, tag = 'scoped memory for tpu_custom_call.1']
    #allocation4 [shape = 'u8[49152]{0}', space=vmem, size = 0xc000, scoped, tag = 'output window, operand 1']
    #allocation5 [shape = 's32[2]{0}', space=sflag, size = 0x8, scoped, tag = 'scoped memory for tpu_custom_call.1']
    %11 = vsyncpa [#allocation3], 0
    %s12 = scalar_lea.sflag [#allocation3], 1
    %13 = vsyncpa %s12, 0
    %14 = vsyncpa [#allocation5], 0
    %s15 = scalar_lea.sflag [#allocation5], 1
    %16 = vsyncpa %s15, 0
    loop: start=0, step=1, limit=4
    $region2: #{tpu_custom_call.1} parent=1 // loop_pre_header
      _
    $region3: #{tpu_custom_call.1} parent=1 // loop_header
      %s18 = sphi 0, %s22
      %p19 = scmp.ge.s32.totalorder %s18, 4
      %s25 = sphi 0, %s37
      %s26 = sphi 0, %s33
      %s27 = sphi 0, %s25
      %s28 = sphi 0, %s26
      %s29 = sphi 0, %s27
      %s30 = sphi 0, %s28
      %s38 = sphi 0, %s38
      %s40 = sphi 0, %s38
      %s41 = sphi 0, %s40
      %s55 = sphi 0, %s41
      %s61 = sphi 0, %s63
      %s64 = sphi 0, %s61
      %s65 = sphi 0, %s64
      %s81 = sphi 0, %s65
      %s85 = sphi 0, %s85
      %s87 = sphi 0, %s85
      %s88 = sphi 0, %s87
      %s102 = sphi 0, %s88
      %s110 = sphi 0, %s112
      %s113 = sphi 0, %s110
      %s114 = sphi 0, %s113
      %s130 = sphi 0, %s114
      %s138 = sphi 0, %s140
      %s141 = sphi 0, %s138
      %s142 = sphi 0, %s141
      %s158 = sphi 0, %s142
      %s166 = sphi 0, %s168
      %s169 = sphi 0, %s166
      %s170 = sphi 0, %s169
      %s186 = sphi 0, %s170
    $region4: #{tpu_custom_call.1} parent=1 // loop_header_branch
      %21 = sbr.rel (%p19) target = $region8
    $region5: #{tpu_custom_call.1} parent=1 // loop_body
      %s23 = ssub.s32 %s18, 1
      %s24 = ssub.s32 %s18, 2
      %s31 = sadd.s32 1, %s26
      %p32 = scmp.ge.s32.totalorder %s31, 1
      %s33 = scalar_select %p32, 0, %s31
      %s34 = sadd.s32 1, %s25
      %s35 = scalar_select %p32, %s34, %s25
      %p36 = scmp.ge.s32.totalorder %s35, 2
      %s37 = scalar_select %p36, 0, %s35
      %s39 = sadd.s32 %s38, 1
      %p42 = scmp.eq.s32.totalorder %s18, 1
      %p43 = scmp.ne.s32.totalorder %s38, %s40
      %p44 = scmp.eq.s32.totalorder %s18, 0
      %p45 = por %p43, %p44
      %p46 = scmp.ne.s32.totalorder %s38, %s40
      %p47 = scmp.eq.s32.totalorder %s23, 1
      %p48 = por %p46, %p47
      %p49 = scmp.ne.s32.totalorder %s40, %s41
      %p50 = scmp.eq.s32.totalorder %s23, 0
      %p51 = por %p49, %p50
      %p52 = scmp.ne.s32.totalorder %s40, %s41
      %p53 = scmp.eq.s32.totalorder %s24, 1
      %p54 = por %p52, %p53
      %p56 = scmp.ne.s32.totalorder %s41, %s55
      %p57 = scmp.eq.s32.totalorder %s24, 0
      %p58 = por %p56, %p57
      %s59 = ssub.s32 %s26, %s33
      %p60 = scmp.eq.s32.totalorder %s59, 0
      %s62 = sadd.s32 %s61, 1
      %s63 = scalar_select %p60, %s61, %s62
      %p66 = pneg %p60
      %p67 = scmp.eq.s32.totalorder %s18, 1
      %p68 = por %p66, %p67
      %p69 = scmp.ne.s32.totalorder %s61, %s64
      %p70 = scmp.eq.s32.totalorder %s18, 0
      %p71 = por %p69, %p70
      %p72 = scmp.ne.s32.totalorder %s61, %s64
      %p73 = scmp.eq.s32.totalorder %s23, 1
      %p74 = por %p72, %p73
      %p75 = scmp.ne.s32.totalorder %s64, %s65
      %p76 = scmp.eq.s32.totalorder %s23, 0
      %p77 = por %p75, %p76
      %p78 = scmp.ne.s32.totalorder %s64, %s65
      %p79 = scmp.eq.s32.totalorder %s24, 1
      %p80 = por %p78, %p79
      %p82 = scmp.ne.s32.totalorder %s65, %s81
      %p83 = scmp.eq.s32.totalorder %s24, 0
      %p84 = por %p82, %p83
      %s86 = sadd.s32 %s85, 1
      %p89 = scmp.eq.s32.totalorder %s18, 1
      %p90 = scmp.ne.s32.totalorder %s85, %s87
      %p91 = scmp.eq.s32.totalorder %s18, 0
      %p92 = por %p90, %p91
      %p93 = scmp.ne.s32.totalorder %s85, %s87
      %p94 = scmp.eq.s32.totalorder %s23, 1
      %p95 = por %p93, %p94
      %p96 = scmp.ne.s32.totalorder %s87, %s88
      %p97 = scmp.eq.s32.totalorder %s23, 0
      %p98 = por %p96, %p97
      %p99 = scmp.ne.s32.totalorder %s87, %s88
      %p100 = scmp.eq.s32.totalorder %s24, 1
      %p101 = por %p99, %p100
      %p103 = scmp.ne.s32.totalorder %s88, %s102
      %p104 = scmp.eq.s32.totalorder %s24, 0
      %p105 = por %p103, %p104
      %s106 = ssub.s32 %s25, %s37
      %s107 = ssub.s32 %s26, %s33
      %s108 = sor.u32 %s106, %s107
      %p109 = scmp.eq.s32.totalorder %s108, 0
      %s111 = sadd.s32 %s110, 1
      %s112 = scalar_select %p109, %s110, %s111
      %p115 = pneg %p109
      %p116 = scmp.eq.s32.totalorder %s18, 1
      %p117 = por %p115, %p116
      %p118 = scmp.ne.s32.totalorder %s110, %s113
      %p119 = scmp.eq.s32.totalorder %s18, 0
      %p120 = por %p118, %p119
      %p121 = scmp.ne.s32.totalorder %s110, %s113
      %p122 = scmp.eq.s32.totalorder %s23, 1
      %p123 = por %p121, %p122
      %p124 = scmp.ne.s32.totalorder %s113, %s114
      %p125 = scmp.eq.s32.totalorder %s23, 0
      %p126 = por %p124, %p125
      %p127 = scmp.ne.s32.totalorder %s113, %s114
      %p128 = scmp.eq.s32.totalorder %s24, 1
      %p129 = por %p127, %p128
      %p131 = scmp.ne.s32.totalorder %s114, %s130
      %p132 = scmp.eq.s32.totalorder %s24, 0
      %p133 = por %p131, %p132
      %s134 = ssub.s32 %s25, %s37
      %s135 = ssub.s32 %s26, %s33
      %s136 = sor.u32 %s134, %s135
      %p137 = scmp.eq.s32.totalorder %s136, 0
      %s139 = sadd.s32 %s138, 1
      %s140 = scalar_select %p137, %s138, %s139
      %p143 = pneg %p137
      %p144 = scmp.eq.s32.totalorder %s18, 1
      %p145 = por %p143, %p144
      %p146 = scmp.ne.s32.totalorder %s138, %s141
      %p147 = scmp.eq.s32.totalorder %s18, 0
      %p148 = por %p146, %p147
      %p149 = scmp.ne.s32.totalorder %s138, %s141
      %p150 = scmp.eq.s32.totalorder %s23, 1
      %p151 = por %p149, %p150
      %p152 = scmp.ne.s32.totalorder %s141, %s142
      %p153 = scmp.eq.s32.totalorder %s23, 0
      %p154 = por %p152, %p153
      %p155 = scmp.ne.s32.totalorder %s141, %s142
      %p156 = scmp.eq.s32.totalorder %s24, 1
      %p157 = por %p155, %p156
      %p159 = scmp.ne.s32.totalorder %s142, %s158
      %p160 = scmp.eq.s32.totalorder %s24, 0
      %p161 = por %p159, %p160
      %s162 = ssub.s32 %s25, %s37
      %s163 = ssub.s32 %s26, %s33
      %s164 = sor.u32 %s162, %s163
      %p165 = scmp.eq.s32.totalorder %s164, 0
      %s167 = sadd.s32 %s166, 1
      %s168 = scalar_select %p165, %s166, %s167
      %p171 = pneg %p165
      %p172 = scmp.eq.s32.totalorder %s18, 1
      %p173 = por %p171, %p172
      %p174 = scmp.ne.s32.totalorder %s166, %s169
      %p175 = scmp.eq.s32.totalorder %s18, 0
      %p176 = por %p174, %p175
      %p177 = scmp.ne.s32.totalorder %s166, %s169
      %p178 = scmp.eq.s32.totalorder %s23, 1
      %p179 = por %p177, %p178
      %p180 = scmp.ne.s32.totalorder %s169, %s170
      %p181 = scmp.eq.s32.totalorder %s23, 0
      %p182 = por %p180, %p181
      %p183 = scmp.ne.s32.totalorder %s169, %s170
      %p184 = scmp.eq.s32.totalorder %s24, 1
      %p185 = por %p183, %p184
      %p187 = scmp.ne.s32.totalorder %s170, %s186
      %p188 = scmp.eq.s32.totalorder %s24, 0
      %p189 = por %p187, %p188
      %p190 = scmp.le.s32.totalorder 1, %s18
      %p191 = scmp.lt.s32.totalorder %s18, 3
      %p192 = pnand %p190, %p191
      %p193 = pneg %p192
      // Predicated region
      $region9: #{tpu_custom_call.1} parent=5 // pred_check
        _
      $region10: #{tpu_custom_call.1} parent=5 // pred_check_branch
        %195 = sbr.rel (%p192) target = $region12
      $region11: #{tpu_custom_call.1} parent=5 // pred_region
        %s196 = ssub.s32 %s18, 1
        // Predicated region
        $region13: #{tpu_custom_call.1} parent=11 // pred_check
          %p197 = pneg %p51
        $region14: #{tpu_custom_call.1} parent=11 // pred_check_branch
          %199 = sbr.rel (%p197) target = $region16
        $region15: #{tpu_custom_call.1} parent=11 // pred_region
          _
        $region16: #{tpu_custom_call.1} parent=11 // pred_fallthru
          _
        // Predicated region
        $region17: #{tpu_custom_call.1} parent=11 // pred_check
          %p200 = pneg %p77
        $region18: #{tpu_custom_call.1} parent=11 // pred_check_branch
          %202 = sbr.rel (%p200) target = $region20
        $region19: #{tpu_custom_call.1} parent=11 // pred_region
          %s203 = smul.u32 2, %s28
          %p204 = scmp.lt.s32.totalorder %s203, 1
          %s205 = scalar_select %p204, %s203, 1
          %s206 = smul.addr %s205, 2
          %s207 = scalar_lea.vmem %s1, %s206
          %s208 = smul.u32 2, %s28
        $region20: #{tpu_custom_call.1} parent=11 // pred_fallthru
          _
        // Predicated region
        $region21: #{tpu_custom_call.1} parent=11 // pred_check
          %p209 = pneg %p98
        $region22: #{tpu_custom_call.1} parent=11 // pred_check_branch
          %211 = sbr.rel (%p209) target = $region24
        $region23: #{tpu_custom_call.1} parent=11 // pred_region
          _
        $region24: #{tpu_custom_call.1} parent=11 // pred_fallthru
          _
      $region12: #{tpu_custom_call.1} parent=5 // pred_fallthru
        _
      %p212 = scmp.lt.s32.totalorder %s18, 2
      // Predicated region
      $region25: #{tpu_custom_call.1} parent=5 // pred_check
        %p213 = pneg %p212
      $region26: #{tpu_custom_call.1} parent=5 // pred_check_branch
        %215 = sbr.rel (%p213) target = $region28
      $region27: #{tpu_custom_call.1} parent=5 // pred_region
        // Predicated region
        $region29: #{tpu_custom_call.1} parent=27 // pred_check
          %p216 = pneg %p120
        $region30: #{tpu_custom_call.1} parent=27 // pred_check_branch
          %218 = sbr.rel (%p216) target = $region32
        $region31: #{tpu_custom_call.1} parent=27 // pred_region
          %s219 = smul.u32 2, %s26
          %p220 = scmp.lt.s32.totalorder %s25, 1
          %s221 = scalar_select %p220, %s25, 1
          %p222 = scmp.lt.s32.totalorder %s219, 1
          %s223 = scalar_select %p222, %s219, 1
          %s224 = smul.addr %s221, 2
          %s225 = sadd.s32 %s223, %s224
          %s226 = smul.addr %s225, 2
          %s227 = scalar_lea.vmem %s3, %s226
          %s228 = smul.u32 2, %s26
        $region32: #{tpu_custom_call.1} parent=27 // pred_fallthru
          _
      $region28: #{tpu_custom_call.1} parent=5 // pred_fallthru
        _
      %p229 = scmp.le.s32.totalorder 1, %s18
      %p230 = scmp.lt.s32.totalorder %s18, 3
      %p231 = pnand %p229, %p230
      %p232 = pneg %p231
      // Predicated region
      $region33: #{tpu_custom_call.1} parent=5 // pred_check
        _
      $region34: #{tpu_custom_call.1} parent=5 // pred_check_branch
        %234 = sbr.rel (%p231) target = $region36
      $region35: #{tpu_custom_call.1} parent=5 // pred_region
        %s235 = ssub.s32 %s18, 1
        %p236 = pneg %p51
        %p237 = pneg %p48
        %s238 = smul.u32 2, %s28
        %p239 = scmp.lt.s32.totalorder %s238, 1
        %s240 = scalar_select %p239, %s238, 1
        %s241 = smul.addr %s240, 2
        %s242 = scalar_lea.vmem %s1, %s241
        %p243 = pneg %p77
        %p244 = pneg %p74
        %p245 = pneg %p98
        %p246 = pneg %p95
        %s247 = smul.u32 2, %s28
        %p248 = scmp.lt.s32.totalorder %s27, 1
        %s249 = scalar_select %p248, %s27, 1
        %p250 = scmp.lt.s32.totalorder %s247, 1
        %s251 = scalar_select %p250, %s247, 1
        %s252 = smul.addr %s249, 2
        %s253 = sadd.s32 %s251, %s252
        %s254 = smul.addr %s253, 2
        %s255 = scalar_lea.vmem %s3, %s254
        %p256 = pneg %p126
        %p257 = pneg %p123
        %p258 = pneg %p154
        %p259 = pneg %p151
        %s260 = sand.u32 %s141, 1
        %s261 = scalar_lea.sflag [#allocation3], %s260
        %s262 = sand.u32 %s141, 1
        %s263 = smul.addr %s262, 48
        %s264 = scalar_lea.vmem [#allocation2], %s263
        %p265 = pneg %p182
        %p266 = pneg %p179
        %s267 = sand.u32 %s169, 1
        %s268 = scalar_lea.sflag [#allocation5], %s267
        %s269 = sand.u32 %s169, 1
        %s270 = smul.addr %s269, 48
        %s271 = scalar_lea.vmem [#allocation4], %s270
        %s272 = smul.u32 2, %s28
        %p273 = scmp.lt.s32.totalorder %s272, 1
        %s274 = scalar_select %p273, %s272, 1
        %s275 = smul.addr %s274, 2
        %s276 = scalar_lea.vmem %s1, %s275
        %s277 = smul.u32 2, %s28
        %s278 = smul.u32 2, %s28
        %p279 = scmp.lt.s32.totalorder %s27, 1
        %s280 = scalar_select %p279, %s27, 1
        %p281 = scmp.lt.s32.totalorder %s278, 1
        %s282 = scalar_select %p281, %s278, 1
        %s283 = smul.addr %s280, 2
        %s284 = sadd.s32 %s282, %s283
        %s285 = smul.addr %s284, 2
        %s286 = scalar_lea.vmem %s3, %s285
        %s287 = smul.u32 2, %s28
        %s288 = smul.u32 2, %s28
        %s289 = smul.u32 2, %s28
        %v291 = vld [vmem:[%s2] sm:$0xf]
        %v292 = vld [vmem:[%s2 + $0x4] sm:$0xf]
        %v293 = vld [vmem:[%s2 + $0x8] sm:$0xf]
        %v294 = vld [vmem:[%s286] sm:$0xf]
        %v295 = vld [vmem:[%s0] sm:$0xff]
        %v296 = vld [vmem:[%s0 + $0x8] sm:$0xff]
        %v297 = vld [vmem:[%s0 + $0x10] sm:$0xff]
        %299 = vset.pattern.permute.xlu0 0
        %300 = vperm.xlu0 %299, %v295
        %v301 = vpop.permute.xlu0 %300
        %304 = vset.pattern.permute.xlu0 0
        %305 = vperm.xlu0 %304, %v296
        %v306 = vpop.permute.xlu0 %305
        %309 = vset.pattern.permute.xlu0 0
        %310 = vperm.xlu0 %309, %v297
        %v311 = vpop.permute.xlu0 %310
        %v316 = vunpack.c.l.b16 %v291
        %v317 = vunpack.c.l.b16 %v292
        %v318 = vunpack.c.l.b16 %v293
        %v319 = vpack.c.b16 %v317, %v316
        %v320 = vpack.c.b16 %v318, %v318
        %v323 = vunpack.c.l.s4 1983009808
        %v324 = vunpack.c.0.s8 %v323
        %v325 = vlaneseq
        %v326 = vshrl.u32 %v325, 7
        %v327 = vsub.s32 %v324, %v326
        %v328 = vrot.slane %v294, %v327
        %v329 = vcombine.high %v328, %v328
        %vm330 = vcmask 31744
        %v332 = vsel %vm330, %v319, 0
        %v335 = vsel %vm330, %v320, 0
        %vm337 = vcmask 1041408
        %v339 = vsel %vm337, %v328, 0
        %v342 = vsel %vm337, %v329, 0
        %344 = vmatprep.subr.bf16.mxu0 %v342
        %345 = vmatpush1.bf16.msra.mxu0 %v339
        %346 = vmatprep.subr.bf16.mxu0 0
        %347 = vmatpush1.bf16.msra.mxu0 0
        %348 = vmatprep.subr.bf16.mxu0 0
        %349 = vmatpush1.bf16.msra.mxu0 0
        %350 = vmatprep.subr.bf16.mxu0 0
        %351 = vmatpush1.bf16.msra.mxu0 0
        %352 = vmatprep.subr.bf16.mxu0 0
        %353 = vmatpush1.bf16.msra.mxu0 0
        %354 = vmatprep.subr.bf16.mxu0 0
        %355 = vmatpush1.bf16.msra.mxu0 0
        %356 = vmatprep.subr.bf16.mxu0 0
        %357 = vmatpush1.bf16.msra.mxu0 0
        %358 = vmatprep.subr.bf16.mxu0 0
        %359 = vmatpush1.bf16.msra.mxu0 0
        %360 = vmatprep.subr.bf16.mxu0 0
        %361 = vmatpush1.bf16.msra.mxu0 0
        %362 = vmatprep.subr.bf16.mxu0 0
        %363 = vmatpush1.bf16.msra.mxu0 0
        %364 = vmatprep.subr.bf16.mxu0 0
        %365 = vmatpush1.bf16.msra.mxu0 0
        %366 = vmatprep.subr.bf16.mxu0 0
        %367 = vmatpush1.bf16.msra.mxu0 0
        %368 = vmatprep.subr.bf16.mxu0 0
        %369 = vmatpush1.bf16.msra.mxu0 0
        %370 = vmatprep.subr.bf16.mxu0 0
        %371 = vmatpush1.bf16.msra.mxu0 0
        %372 = vmatprep.subr.bf16.mxu0 0
        %373 = vmatpush1.bf16.msra.mxu0 0
        %374 = vmatprep.subr.bf16.mxu0 0
        %375 = vmatpush1.bf16.msra.mxu0 0
        %376 = vmatprep.mubr.bf16.mxu0 0
        %377 = vmatmul.mubr.bf16.gmra.mrb[0].mxu0 %v332
        %v378 = vpop.f32.mrb[0].mxu0
        %v379 = vadd.f32 %v301, %v378
        %v380 = vpop.f32.mrb[0].mxu0
        %v381 = vadd.f32 %v301, %v380
        %v382 = vpop.f32.mrb[0].mxu0
        %v383 = vadd.f32 %v306, %v382
        %v384 = vpop.f32.mrb[0].mxu0
        %v385 = vadd.f32 %v306, %v384
        %386 = vmatprep.mubr.bf16.mxu0 0
        %387 = vmatmul.mubr.bf16.gmra.mrb[0].mxu0 %v335
        %v388 = vpop.f32.mrb[0].mxu0
        %v389 = vadd.f32 %v311, %v388
        %v390 = vpop.f32.mrb[0].mxu0
        %v391 = vadd.f32 %v311, %v390
        %v392 = vpop.f32.mrb[0].mxu0
        %v393 = vpop.f32.mrb[0].mxu0
        %394 = vdwg.mxu0
        %395 = vst [vmem:[%s264] sm:$0xff] %v379
        %396 = vst [vmem:[%s264 + $0x8] sm:$0xff] %v381
        %397 = vst [vmem:[%s264 + $0x10] sm:$0xff] %v383
        %398 = vst [vmem:[%s264 + $0x18] sm:$0xff] %v385
        %399 = vst [vmem:[%s264 + $0x20] sm:$0xff] %v389
        %400 = vst [vmem:[%s264 + $0x28] sm:$0xff] %v391
        %v401 = vsub.f32 0.0, %v379
        %v402 = vsub.f32 0.0, %v381
        %v403 = vsub.f32 0.0, %v383
        %v404 = vsub.f32 0.0, %v385
        %v405 = vsub.f32 0.0, %v389
        %v406 = vsub.f32 0.0, %v391
        %v407 = vmin.f32 %v401, 80.0
        %v408 = vmin.f32 %v402, 80.0
        %v409 = vmin.f32 %v403, 80.0
        %v410 = vmin.f32 %v404, 80.0
        %v411 = vmin.f32 %v405, 80.0
        %v412 = vmin.f32 %v406, 80.0
        %v413 = vmul.f32 %v407, 1.442695
        %v414 = vpow.pop %v413
        %v415 = vmul.f32 %v408, 1.442695
        %v416 = vpow.pop %v415
        %v417 = vmul.f32 %v409, 1.442695
        %v418 = vpow.pop %v417
        %v419 = vmul.f32 %v410, 1.442695
        %v420 = vpow.pop %v419
        %v421 = vmul.f32 %v411, 1.442695
        %v422 = vpow.pop %v421
        %v423 = vmul.f32 %v412, 1.442695
        %v424 = vpow.pop %v423
        %v425 = vadd.f32 %v414, 1.0
        %v426 = vadd.f32 %v416, 1.0
        %v427 = vadd.f32 %v418, 1.0
        %v428 = vadd.f32 %v420, 1.0
        %v429 = vadd.f32 %v422, 1.0
        %v430 = vadd.f32 %v424, 1.0
        %v431 = vrcp.pop %v425
        %v432 = vrcp.pop %v426
        %v433 = vrcp.pop %v427
        %v434 = vrcp.pop %v428
        %v435 = vrcp.pop %v429
        %v436 = vrcp.pop %v430
        %v437 = vmul.f32 %v425, %v431
        %v438 = vmul.f32 %v426, %v432
        %v439 = vmul.f32 %v427, %v433
        %v440 = vmul.f32 %v428, %v434
        %v441 = vmul.f32 %v429, %v435
        %v442 = vmul.f32 %v430, %v436
        %v443 = vsub.f32 2.0, %v437
        %v444 = vsub.f32 2.0, %v438
        %v445 = vsub.f32 2.0, %v439
        %v446 = vsub.f32 2.0, %v440
        %v447 = vsub.f32 2.0, %v441
        %v448 = vsub.f32 2.0, %v442
        %v449 = vmul.f32 %v431, %v443
        %v450 = vmul.f32 %v432, %v444
        %v451 = vmul.f32 %v433, %v445
        %v452 = vmul.f32 %v434, %v446
        %v453 = vmul.f32 %v435, %v447
        %v454 = vmul.f32 %v436, %v448
        %v455 = vld [vmem:[%s276] ss:$2 sm:$0x3]
        %s456 = scalar_lea.vmem %s276, 1
        %v457 = vld [vmem:[%s456] ss:$2 sm:$0x3]
        %s458 = scalar_lea.vmem %s0, 24
        %v459 = vld [vmem:[%s458] sm:$0xff]
        %v460 = vld [vmem:[%s458 + $0x8] sm:$0xff]
        %v461 = vld [vmem:[%s458 + $0x10] sm:$0xff]
        %463 = vset.pattern.permute.xlu0 0
        %464 = vperm.xlu0 %463, %v459
        %v465 = vpop.permute.xlu0 %464
        %468 = vset.pattern.permute.xlu0 0
        %469 = vperm.xlu0 %468, %v460
        %v470 = vpop.permute.xlu0 %469
        %473 = vset.pattern.permute.xlu0 0
        %474 = vperm.xlu0 %473, %v461
        %v475 = vpop.permute.xlu0 %474
        %v477 = vmul.f32 %v465, %v449
        %v478 = vmul.f32 %v465, %v450
        %v479 = vmul.f32 %v470, %v451
        %v480 = vmul.f32 %v470, %v452
        %v481 = vmul.f32 %v475, %v453
        %v482 = vmul.f32 %v475, %v454
        %s483 = scalar_lea.vmem %s0, 48
        %v484 = vld [vmem:[%s483] sm:$0xff]
        %v485 = vld [vmem:[%s483 + $0x8] sm:$0xff]
        %v486 = vld [vmem:[%s483 + $0x10] sm:$0xff]
        %488 = vset.pattern.permute.xlu0 0
        %489 = vperm.xlu0 %488, %v484
        %v490 = vpop.permute.xlu0 %489
        %493 = vset.pattern.permute.xlu0 0
        %494 = vperm.xlu0 %493, %v485
        %v495 = vpop.permute.xlu0 %494
        %498 = vset.pattern.permute.xlu0 0
        %499 = vperm.xlu0 %498, %v486
        %v500 = vpop.permute.xlu0 %499
        %v502 = vadd.f32 %v477, %v490
        %v503 = vadd.f32 %v478, %v490
        %v504 = vadd.f32 %v479, %v495
        %v505 = vadd.f32 %v480, %v495
        %v506 = vadd.f32 %v481, %v500
        %v507 = vadd.f32 %v482, %v500
        %v508 = vmul.f32 %v502, %v449
        %v509 = vmul.f32 %v503, %v450
        %v510 = vmul.f32 %v504, %v451
        %v511 = vmul.f32 %v505, %v452
        %v512 = vmul.f32 %v506, %v453
        %v513 = vmul.f32 %v507, %v454
        %s514 = scalar_lea.vmem %s0, 72
        %v515 = vld [vmem:[%s514] sm:$0xff]
        %v516 = vld [vmem:[%s514 + $0x8] sm:$0xff]
        %v517 = vld [vmem:[%s514 + $0x10] sm:$0xff]
        %519 = vset.pattern.permute.xlu0 0
        %520 = vperm.xlu0 %519, %v515
        %v521 = vpop.permute.xlu0 %520
        %524 = vset.pattern.permute.xlu0 0
        %525 = vperm.xlu0 %524, %v516
        %v526 = vpop.permute.xlu0 %525
        %529 = vset.pattern.permute.xlu0 0
        %530 = vperm.xlu0 %529, %v517
        %v531 = vpop.permute.xlu0 %530
        %v533 = vadd.f32 %v508, %v521
        %v534 = vadd.f32 %v509, %v521
        %v535 = vadd.f32 %v510, %v526
        %v536 = vadd.f32 %v511, %v526
        %v537 = vadd.f32 %v512, %v531
        %v538 = vadd.f32 %v513, %v531
        %s539 = scalar_lea.vmem %s0, 96
        %v540 = vld [vmem:[%s539] sm:$0xff]
        %v541 = vld [vmem:[%s539 + $0x8] sm:$0xff]
        %v542 = vld [vmem:[%s539 + $0x10] sm:$0xff]
        %544 = vset.pattern.permute.xlu0 0
        %545 = vperm.xlu0 %544, %v540
        %v546 = vpop.permute.xlu0 %545
        %549 = vset.pattern.permute.xlu0 0
        %550 = vperm.xlu0 %549, %v541
        %v551 = vpop.permute.xlu0 %550
        %554 = vset.pattern.permute.xlu0 0
        %555 = vperm.xlu0 %554, %v542
        %v556 = vpop.permute.xlu0 %555
        %v559 = vlaneseq
        %v560 = vshrl.u32 %v559, 7
        %v561 = vsub.s32 0, %v560
        %v562 = vrot.slane %v455, %v561
        %v563 = vlaneseq
        %v564 = vshrl.u32 %v563, 7
        %v565 = vsub.s32 1, %v564
        %v566 = vrot.slane %v455, %v565
        %v569 = vmul.f32 %v546, %v562
        %v570 = vmul.f32 %v546, %v566
        %v571 = vmul.f32 %v551, %v562
        %v572 = vmul.f32 %v551, %v566
        %v573 = vmul.f32 %v556, %v562
        %v574 = vmul.f32 %v556, %v566
        %v575 = vadd.f32 %v533, %v569
        %v576 = vadd.f32 %v534, %v570
        %v577 = vadd.f32 %v535, %v571
        %v578 = vadd.f32 %v536, %v572
        %v579 = vadd.f32 %v537, %v573
        %v580 = vadd.f32 %v538, %v574
        %s581 = scalar_lea.vmem %s0, 120
        %v582 = vld [vmem:[%s581] sm:$0xff]
        %v583 = vld [vmem:[%s581 + $0x8] sm:$0xff]
        %v584 = vld [vmem:[%s581 + $0x10] sm:$0xff]
        %586 = vset.pattern.permute.xlu0 0
        %587 = vperm.xlu0 %586, %v582
        %v588 = vpop.permute.xlu0 %587
        %591 = vset.pattern.permute.xlu0 0
        %592 = vperm.xlu0 %591, %v583
        %v593 = vpop.permute.xlu0 %592
        %596 = vset.pattern.permute.xlu0 0
        %597 = vperm.xlu0 %596, %v584
        %v598 = vpop.permute.xlu0 %597
        %v601 = vlaneseq
        %v602 = vshrl.u32 %v601, 7
        %v603 = vsub.s32 0, %v602
        %v604 = vrot.slane %v457, %v603
        %v605 = vlaneseq
        %v606 = vshrl.u32 %v605, 7
        %v607 = vsub.s32 1, %v606
        %v608 = vrot.slane %v457, %v607
        %v611 = vmul.f32 %v588, %v604
        %v612 = vmul.f32 %v588, %v608
        %v613 = vmul.f32 %v593, %v604
        %v614 = vmul.f32 %v593, %v608
        %v615 = vmul.f32 %v598, %v604
        %v616 = vmul.f32 %v598, %v608
        %v617 = vadd.f32 %v575, %v611
        %v618 = vadd.f32 %v576, %v612
        %v619 = vadd.f32 %v577, %v613
        %v620 = vadd.f32 %v578, %v614
        %v621 = vadd.f32 %v579, %v615
        %v622 = vadd.f32 %v580, %v616
        %623 = vst [vmem:[%s271] sm:$0xff] %v617
        %624 = vst [vmem:[%s271 + $0x8] sm:$0xff] %v618
        %625 = vst [vmem:[%s271 + $0x10] sm:$0xff] %v619
        %626 = vst [vmem:[%s271 + $0x18] sm:$0xff] %v620
        %627 = vst [vmem:[%s271 + $0x20] sm:$0xff] %v621
        %628 = vst [vmem:[%s271 + $0x28] sm:$0xff] %v622
        %s629 = sand.u32 %s141, 1
        %s630 = scalar_lea.sflag [#allocation3], %s629
        %s631 = sand.u32 %s141, 1
        %s632 = smul.addr %s631, 48
        %s633 = scalar_lea.vmem [#allocation2], %s632
        %s634 = sand.u32 %s169, 1
        %s635 = scalar_lea.sflag [#allocation5], %s634
        %s636 = sand.u32 %s169, 1
        %s637 = smul.addr %s636, 48
        %s638 = scalar_lea.vmem [#allocation4], %s637
        // Predicated region
        $region37: #{tpu_custom_call.1} parent=35 // pred_check
          %p639 = pneg %p151
        $region38: #{tpu_custom_call.1} parent=35 // pred_check_branch
          %641 = sbr.rel (%p639) target = $region40
        $region39: #{tpu_custom_call.1} parent=35 // pred_region
          %s642 = smul.u32 2, %s28
          %s644 = ssub.s32 768, 768
          %645 = vsyncadd %s630, %s644
          %s646 = smul.addr %s27, 6
          %s647 = sadd.s32 %s642, %s646
          %s648 = smul.addr %s647, 128
          %s649 = scalar_lea.hbm %s4, %s648
          %s650 = sshll.u32 %s633, 4
          %s651 = int_to_ptr.vmem [resolvable:$true] %s650
          %656 = dma.vmem_to_hbm [thread:$0]  %s651, 768, %s649, %s630, 256, 256, 16
        $region40: #{tpu_custom_call.1} parent=35 // pred_fallthru
          _
        // Predicated region
        $region41: #{tpu_custom_call.1} parent=35 // pred_check
          %p657 = pneg %p179
        $region42: #{tpu_custom_call.1} parent=35 // pred_check_branch
          %659 = sbr.rel (%p657) target = $region44
        $region43: #{tpu_custom_call.1} parent=35 // pred_region
          %s660 = smul.u32 2, %s28
          %s662 = ssub.s32 768, 768
          %663 = vsyncadd %s635, %s662
          %s664 = smul.addr %s27, 6
          %s665 = sadd.s32 %s660, %s664
          %s666 = smul.addr %s665, 128
          %s667 = scalar_lea.hbm %s5, %s666
          %s668 = sshll.u32 %s638, 4
          %s669 = int_to_ptr.vmem [resolvable:$true] %s668
          %674 = dma.vmem_to_hbm [thread:$0]  %s669, 768, %s667, %s635, 256, 256, 16
        $region44: #{tpu_custom_call.1} parent=35 // pred_fallthru
          _
      $region36: #{tpu_custom_call.1} parent=5 // pred_fallthru
        _
      %p675 = scmp.le.s32.totalorder 2, %s18
      // Predicated region
      $region45: #{tpu_custom_call.1} parent=5 // pred_check
        %p676 = pneg %p675
      $region46: #{tpu_custom_call.1} parent=5 // pred_check_branch
        %678 = sbr.rel (%p676) target = $region48
      $region47: #{tpu_custom_call.1} parent=5 // pred_region
        %s679 = ssub.s32 %s18, 2
        // Predicated region
        $region49: #{tpu_custom_call.1} parent=47 // pred_check
          %p680 = pneg %p157
        $region50: #{tpu_custom_call.1} parent=47 // pred_check_branch
          %682 = sbr.rel (%p680) target = $region52
        $region51: #{tpu_custom_call.1} parent=47 // pred_region
          %s683 = sand.u32 %s142, 1
          %s684 = scalar_lea.sflag [#allocation3], %s683
          %s685 = sand.u32 %s142, 1
          %s686 = smul.addr %s685, 48
          %s687 = scalar_lea.vmem [#allocation2], %s686
          %688 = dma.done %s684, 768
        $region52: #{tpu_custom_call.1} parent=47 // pred_fallthru
          _
        // Predicated region
        $region53: #{tpu_custom_call.1} parent=47 // pred_check
          %p689 = pneg %p185
        $region54: #{tpu_custom_call.1} parent=47 // pred_check_branch
          %691 = sbr.rel (%p689) target = $region56
        $region55: #{tpu_custom_call.1} parent=47 // pred_region
          %s692 = sand.u32 %s170, 1
          %s693 = scalar_lea.sflag [#allocation5], %s692
          %s694 = sand.u32 %s170, 1
          %s695 = smul.addr %s694, 48
          %s696 = scalar_lea.vmem [#allocation4], %s695
          %697 = dma.done %s693, 768
        $region56: #{tpu_custom_call.1} parent=47 // pred_fallthru
          _
      $region48: #{tpu_custom_call.1} parent=5 // pred_fallthru
        _
    $region6: #{tpu_custom_call.1} parent=1 // loop_footer
      %s22 = sadd.s32 1, %s18
    $region7: #{tpu_custom_call.1} parent=1 // loop_footer_branch
      %17 = sbr.rel target = $region3
    $region8: #{tpu_custom_call.1} parent=1 // loop_exit
      _
    %698 = vsyncpa [#allocation3], 1
    %s699 = scalar_lea.sflag [#allocation3], 1
    %700 = vsyncpa %s699, 1
    %701 = vsyncpa [#allocation5], 1
    %s702 = scalar_lea.sflag [#allocation5], 1
    %703 = vsyncpa %s702, 1

</llo_original>
